<compile_context>
chip_gen: v6e
topology: v6e:2x2x1
jax: 0.10.0
libtpu: 0.0.40
codegen_flags: <defaults>
</compile_context>

<pallas_src>
import jax
import jax.numpy as jnp
from jax.experimental import pallas as pl
from jax.experimental.pallas import tpu as pltpu


# --------------------------------------------------------------------------
# Kernel
# --------------------------------------------------------------------------
def _bottleneck1x1_kernel(x_ref,                 # (1, Cin, TN)
                          w1_ref, b1_ref,        # (P,  Cin), (P,  1)
                          w2_ref, b2_ref,        # (P,  P),   (P,  1)
                          w3_ref, b3_ref,        # (Cout, P), (Cout, 1)
                          o_ref):                # (1, Cout, TN)
    cdt = w1_ref.dtype   # matmul operand dtype (f32 or bf16); acc is always f32

    # conv1 (1x1) + bn1 + relu   (BN folded into w1/b1 on host)
    h = jnp.dot(w1_ref[...], x_ref[0].astype(cdt),
                preferred_element_type=jnp.float32) + b1_ref[...]
    h = jnp.maximum(h, 0.0)

    # conv2 (1x1, stride=1) + bn2 + relu
    h = jnp.dot(w2_ref[...], h.astype(cdt),
                preferred_element_type=jnp.float32) + b2_ref[...]
    h = jnp.maximum(h, 0.0)

    # conv3 (1x1, expansion) + bn3
    h = jnp.dot(w3_ref[...], h.astype(cdt),
                preferred_element_type=jnp.float32) + b3_ref[...]

    # residual add (downsample=None => identity) + final relu.
    # Re-read the VMEM-resident x block here (no long-lived upcast copy).
    o_ref[0] = jnp.maximum(h + x_ref[0].astype(jnp.float32), 0.0).astype(o_ref.dtype)


# --------------------------------------------------------------------------
# Host-side helpers
# --------------------------------------------------------------------------
def _fold_bn(w, gamma, beta, mean, var, eps, compute_dtype):
    """Fold eval-mode BatchNorm into a bias-free 1x1 conv: y = W_eff @ x + b_eff.

    The fold itself happens in f32; only the resulting weight is cast to the
    matmul operand dtype. The bias stays f32 (added to the f32 accumulator).
    """
    scale = gamma.astype(jnp.float32) / jnp.sqrt(var.astype(jnp.float32) + eps)
    w_eff = (w.astype(jnp.float32) * scale[:, None]).astype(compute_dtype)
    b_eff = (beta.astype(jnp.float32) - mean.astype(jnp.float32) * scale)
    return w_eff, b_eff.reshape(-1, 1)


def _pick_token_tile(N, B, Cin, Cout, elem_bytes, weight_bytes,
                     target_tn=1024, vmem_budget=24 << 20):
    """Pick a lane-aligned token tile TN.

    Budget: double-buffered x-in + out tiles plus (double-buffered) weights
    must stay under ~24 MiB -> safe on v7x (64 MiB physical / 32 MiB scoped)
    and leaves headroom everywhere else.
    """
    if N < 128:
        return N                                   # single full-row (full-dim) block

    io_per_tok = 2 * (Cin + Cout) * elem_bytes     # double-buffered in + out, per token
    cap = (vmem_budget - 2 * weight_bytes) // max(io_per_tok, 1)
    cap = max(128, (cap // 128) * 128)

    tn = min(target_tn, cap, (N // 128) * 128)

    # Prefer a tile that evenly divides N: every store is unmasked & lane-dense.
    if N % 128 == 0:
        d = tn
        while d > 128 and N % d:
            d -= 128
        if N % d == 0:
            tn = d

    # Megacore (v7x): make sure there are at least two grid steps when B == 1.
    if B == 1 and N > 128 and pl.cdiv(N, tn) < 2:
        tn = max(128, ((pl.cdiv(N, 2) + 127) // 128) * 128)

    return tn


def meta_bottleneck1x1(x_nchw, params, *, eps=1e-5, target_tile_n=1024,
                       compute_dtype=jnp.float32, vmem_limit_bytes=32 << 20):
    """x_nchw: (B, Cin, H, W). Returns (B, Cout, H, W), Cout = 4 * planes.

    Implements MetaBottleneck1x1.forward with stride=1 and downsample=None
    (the module defaults); BN is applied in eval mode with running stats.
    """
    # TODO(synk): stride > 1 and the optional `downsample` branch are not
    #             implemented (module defaults exercise stride=1, downsample=None).
    B, Cin, H, W = x_nchw.shape
    N = H * W
    P = params["w1"].shape[0]
    Cout = params["w3"].shape[0]
    assert Cout == Cin, "identity residual needs inplanes == planes * expansion"

    w1, b1 = _fold_bn(params["w1"], params["bn1_gamma"], params["bn1_beta"],
                      params["bn1_mean"], params["bn1_var"], eps, compute_dtype)
    w2, b2 = _fold_bn(params["w2"], params["bn2_gamma"], params["bn2_beta"],
                      params["bn2_mean"], params["bn2_var"], eps, compute_dtype)
    w3, b3 = _fold_bn(params["w3"], params["bn3_gamma"], params["bn3_beta"],
                      params["bn3_mean"], params["bn3_var"], eps, compute_dtype)

    elem_bytes = jnp.dtype(x_nchw.dtype).itemsize
    wdt_bytes = jnp.dtype(compute_dtype).itemsize
    weight_bytes = ((w1.size + w2.size + w3.size) * wdt_bytes
                    + (b1.size + b2.size + b3.size) * 4)

    tn = _pick_token_tile(N, B, Cin, Cout, elem_bytes, weight_bytes,
                          target_tn=target_tile_n)
    n_tiles = pl.cdiv(N, tn)

    x_bcn = x_nchw.reshape(B, Cin, N)

    def full(arr):
        nd = arr.ndim
        return pl.BlockSpec(arr.shape, lambda b, j, _nd=nd: (0,) * _nd)

    cost = pl.CostEstimate(
        flops=2 * B * N * (P * Cin + P * P + Cout * P),
        transcendentals=0,
        bytes_accessed=B * N * (Cin + Cout) * elem_bytes + weight_bytes,
    )

    out = pl.pallas_call(
        _bottleneck1x1_kernel,
        out_shape=jax.ShapeDtypeStruct((B, Cout, N), x_bcn.dtype),
        grid_spec=pltpu.PrefetchScalarGridSpec(
            num_scalar_prefetch=0,
            grid=(B, n_tiles),
            in_specs=[
                pl.BlockSpec((1, Cin, tn), lambda b, j: (b, 0, j)),   # x tile
                full(w1), full(b1),                                   # conv1 + bn1
                full(w2), full(b2),                                   # conv2 + bn2
                full(w3), full(b3),                                   # conv3 + bn3
            ],
            out_specs=pl.BlockSpec((1, Cout, tn), lambda b, j: (b, 0, j)),
        ),
        compiler_params=pltpu.CompilerParams(
            dimension_semantics=("parallel", "parallel"),
            vmem_limit_bytes=vmem_limit_bytes),
        cost_estimate=cost,
    )(x_bcn, w1, b1, w2, b2, w3, b3)

    return out.reshape(B, Cout, H, W)


# --------------------------------------------------------------------------
# Pure-JAX reference (mirrors the PyTorch forward, eval-mode BN)
# --------------------------------------------------------------------------
def _reference(x_nchw, params, eps=1e-5):
    B, Cin, H, W = x_nchw.shape
    N = H * W
    x = x_nchw.reshape(B, Cin, N)

    def conv_bn(h, w, g, bb, m, v):
        y = jnp.einsum("oi,bin->bon", w, h)
        scale = g / jnp.sqrt(v + eps)
        return y * scale[None, :, None] + (bb - m * scale)[None, :, None]

    h = jax.nn.relu(conv_bn(x, params["w1"], params["bn1_gamma"], params["bn1_beta"],
                            params["bn1_mean"], params["bn1_var"]))
    h = jax.nn.relu(conv_bn(h, params["w2"], params["bn2_gamma"], params["bn2_beta"],
                            params["bn2_mean"], params["bn2_var"]))
    h = conv_bn(h, params["w3"], params["bn3_gamma"], params["bn3_beta"],
                params["bn3_mean"], params["bn3_var"])
    out = jax.nn.relu(h + x)
    return out.reshape(B, -1, H, W)


def make_params(key, inplanes, planes, expansion=4):
    cout = planes * expansion
    ks = jax.random.split(key, 6)
    std = 0.1

    def bn(k, c):
        k1, k2, k3, k4 = jax.random.split(k, 4)
        return {
            "gamma": 1.0 + 0.1 * jax.random.normal(k1, (c,), jnp.float32),
            "beta":  0.1 * jax.random.normal(k2, (c,), jnp.float32),
            "mean":  0.1 * jax.random.normal(k3, (c,), jnp.float32),
            "var":   1.0 + 0.1 * jax.random.uniform(k4, (c,), jnp.float32),
        }

    bn1, bn2, bn3 = bn(ks[3], planes), bn(ks[4], planes), bn(ks[5], cout)
    return {
        "w1": std * jax.random.normal(ks[0], (planes, inplanes), jnp.float32),
        "w2": std * jax.random.normal(ks[1], (planes, planes), jnp.float32),
        "w3": std * jax.random.normal(ks[2], (cout, planes), jnp.float32),
        "bn1_gamma": bn1["gamma"], "bn1_beta": bn1["beta"],
        "bn1_mean": bn1["mean"], "bn1_var": bn1["var"],
        "bn2_gamma": bn2["gamma"], "bn2_beta": bn2["beta"],
        "bn2_mean": bn2["mean"], "bn2_var": bn2["var"],
        "bn3_gamma": bn3["gamma"], "bn3_beta": bn3["beta"],
        "bn3_mean": bn3["mean"], "bn3_var": bn3["var"],
    }


if __name__ == "__main__":
    key = jax.random.PRNGKey(0)
    kx, kp = jax.random.split(key)

    # inplanes must equal planes * expansion for the identity residual path.
    B, planes, expansion, H, W = 2, 4, 4, 16, 16
    inplanes = planes * expansion                      # 16

    x = jax.random.normal(kx, (B, inplanes, H, W), jnp.float32)
    params = make_params(kp, inplanes, planes, expansion)

    ref = _reference(x, params)

    # f32 compute path (reference precision).
    out = jax.block_until_ready(meta_bottleneck1x1(x, params))
    assert out.shape == (B, inplanes, H, W)
    assert jnp.allclose(out, ref, atol=1e-4, rtol=1e-4), "f32 mismatch vs reference"

    # bf16 matmul-operand path (v6e/v7x fast path): f32 BN fold + f32 acc/epilogue.
    out_bf16 = jax.block_until_ready(
        meta_bottleneck1x1(x, params, compute_dtype=jnp.bfloat16))
    assert out_bf16.shape == (B, inplanes, H, W)
    assert float(jnp.max(jnp.abs(out_bf16 - ref))) < 0.25, "bf16 path diverged"

    print("KERNEL_OK")
</pallas_src>

<mosaic_0001>
module attributes {stable_mosaic.version = 11 : i64} {
  func.func @_bottleneck1x1_kernel(%arg0: i32, %arg1: i32, %arg2: memref<1x16x256xf32, #tpu.memory_space<vmem>>, %arg3: memref<4x16xf32, #tpu.memory_space<vmem>>, %arg4: memref<4x1xf32, #tpu.memory_space<vmem>>, %arg5: memref<4x4xf32, #tpu.memory_space<vmem>>, %arg6: memref<4x1xf32, #tpu.memory_space<vmem>>, %arg7: memref<16x4xf32, #tpu.memory_space<vmem>>, %arg8: memref<16x1xf32, #tpu.memory_space<vmem>>, %arg9: memref<1x16x256xf32, #tpu.memory_space<vmem>>) attributes {dimension_semantics = [#tpu.dimension_semantics<parallel>, #tpu.dimension_semantics<parallel>], iteration_bounds = array<i64: 2, 1>, scalar_prefetch = 0 : i64, scratch_operands = 0 : i64, tpu.core_type = #tpu.core_type<tc>, window_params = [{transform_indices = @transform_0, window_bounds = array<i64: 1, 16, 256>}, {pipeline_mode = #tpu.pipeline_mode<synchronous>, transform_indices = @transform_1, window_bounds = array<i64: 4, 16>}, {pipeline_mode = #tpu.pipeline_mode<synchronous>, transform_indices = @transform_2, window_bounds = array<i64: 4, 1>}, {pipeline_mode = #tpu.pipeline_mode<synchronous>, transform_indices = @transform_3, window_bounds = array<i64: 4, 4>}, {pipeline_mode = #tpu.pipeline_mode<synchronous>, transform_indices = @transform_4, window_bounds = array<i64: 4, 1>}, {pipeline_mode = #tpu.pipeline_mode<synchronous>, transform_indices = @transform_5, window_bounds = array<i64: 16, 4>}, {pipeline_mode = #tpu.pipeline_mode<synchronous>, transform_indices = @transform_6, window_bounds = array<i64: 16, 1>}, {transform_indices = @transform_7, window_bounds = array<i64: 1, 16, 256>}]} {
    %c0 = arith.constant 0 : index
    %c0_0 = arith.constant 0 : index
    %0 = vector.load %arg3[%c0, %c0_0] : memref<4x16xf32, #tpu.memory_space<vmem>>, vector<4x16xf32>
    %c0_1 = arith.constant 0 : index
    %c0_2 = arith.constant 0 : index
    %c0_3 = arith.constant 0 : index
    %1 = vector.load %arg2[%c0_1, %c0_2, %c0_3] : memref<1x16x256xf32, #tpu.memory_space<vmem>>, vector<1x16x256xf32>
    %2 = vector.shape_cast %1 : vector<1x16x256xf32> to vector<16x256xf32>
    %cst = arith.constant dense<0.000000e+00> : vector<4x256xf32>
    %3 = tpu.matmul %0, %2, %cst {dimension_numbers = #tpu.dot_dimension_numbers<[1], [0], [0], [1], [0, 0, 1, 1], [], []>} : vector<4x16xf32>, vector<16x256xf32>, vector<4x256xf32> -> vector<4x256xf32>
    %c0_4 = arith.constant 0 : index
    %c0_5 = arith.constant 0 : index
    %4 = vector.load %arg4[%c0_4, %c0_5] : memref<4x1xf32, #tpu.memory_space<vmem>>, vector<4x1xf32>
    %5 = vector.broadcast %4 : vector<4x1xf32> to vector<4x256xf32>
    %6 = arith.addf %3, %5 : vector<4x256xf32>
    %cst_6 = arith.constant 0.000000e+00 : f32
    %7 = vector.broadcast %cst_6 : f32 to vector<4x256xf32>
    %8 = arith.maximumf %6, %7 : vector<4x256xf32>
    %c0_7 = arith.constant 0 : index
    %c0_8 = arith.constant 0 : index
    %9 = vector.load %arg5[%c0_7, %c0_8] : memref<4x4xf32, #tpu.memory_space<vmem>>, vector<4x4xf32>
    %cst_9 = arith.constant dense<0.000000e+00> : vector<4x256xf32>
    %10 = tpu.matmul %9, %8, %cst_9 {dimension_numbers = #tpu.dot_dimension_numbers<[1], [0], [0], [1], [0, 0, 1, 1], [], []>} : vector<4x4xf32>, vector<4x256xf32>, vector<4x256xf32> -> vector<4x256xf32>
    %c0_10 = arith.constant 0 : index
    %c0_11 = arith.constant 0 : index
    %11 = vector.load %arg6[%c0_10, %c0_11] : memref<4x1xf32, #tpu.memory_space<vmem>>, vector<4x1xf32>
    %12 = vector.broadcast %11 : vector<4x1xf32> to vector<4x256xf32>
    %13 = arith.addf %10, %12 : vector<4x256xf32>
    %cst_12 = arith.constant 0.000000e+00 : f32
    %14 = vector.broadcast %cst_12 : f32 to vector<4x256xf32>
    %15 = arith.maximumf %13, %14 : vector<4x256xf32>
    %c0_13 = arith.constant 0 : index
    %c0_14 = arith.constant 0 : index
    %16 = vector.load %arg7[%c0_13, %c0_14] : memref<16x4xf32, #tpu.memory_space<vmem>>, vector<16x4xf32>
    %cst_15 = arith.constant dense<0.000000e+00> : vector<16x256xf32>
    %17 = tpu.matmul %16, %15, %cst_15 {dimension_numbers = #tpu.dot_dimension_numbers<[1], [0], [0], [1], [0, 0, 1, 1], [], []>} : vector<16x4xf32>, vector<4x256xf32>, vector<16x256xf32> -> vector<16x256xf32>
    %c0_16 = arith.constant 0 : index
    %c0_17 = arith.constant 0 : index
    %18 = vector.load %arg8[%c0_16, %c0_17] : memref<16x1xf32, #tpu.memory_space<vmem>>, vector<16x1xf32>
    %19 = vector.broadcast %18 : vector<16x1xf32> to vector<16x256xf32>
    %20 = arith.addf %17, %19 : vector<16x256xf32>
    %c0_18 = arith.constant 0 : index
    %c0_19 = arith.constant 0 : index
    %c0_20 = arith.constant 0 : index
    %21 = vector.load %arg2[%c0_18, %c0_19, %c0_20] : memref<1x16x256xf32, #tpu.memory_space<vmem>>, vector<1x16x256xf32>
    %22 = vector.shape_cast %21 : vector<1x16x256xf32> to vector<16x256xf32>
    %23 = arith.addf %20, %22 : vector<16x256xf32>
    %cst_21 = arith.constant 0.000000e+00 : f32
    %24 = vector.broadcast %cst_21 : f32 to vector<16x256xf32>
    %25 = arith.maximumf %23, %24 : vector<16x256xf32>
    %c0_22 = arith.constant 0 : index
    %c0_23 = arith.constant 0 : index
    %c0_24 = arith.constant 0 : index
    %26 = vector.load %arg9[%c0_22, %c0_23, %c0_24] : memref<1x16x256xf32, #tpu.memory_space<vmem>>, vector<1x16x256xf32>
    %27 = vector.shape_cast %26 : vector<1x16x256xf32> to vector<16x256xf32>
    %28 = vector.shape_cast %25 : vector<16x256xf32> to vector<1x16x256xf32>
    tpu.vector_store %arg9[%c0_22, %c0_23, %c0_24], %28 {strides = array<i32>} : memref<1x16x256xf32, #tpu.memory_space<vmem>>, vector<1x16x256xf32>,
    return
  }
  func.func @transform_0(%arg0: i32, %arg1: i32) -> (i32, i32, i32) {
    %c0_i32 = arith.constant 0 : i32
    %c0_i32_0 = arith.constant 0 : i32
    return %arg0, %c0_i32, %arg1 : i32, i32, i32
  }
  func.func @transform_1(%arg0: i32, %arg1: i32) -> (i32, i32) {
    %c0_i32 = arith.constant 0 : i32
    %c0_i32_0 = arith.constant 0 : i32
    %c0_i32_1 = arith.constant 0 : i32
    return %c0_i32, %c0_i32_0 : i32, i32
  }
  func.func @transform_2(%arg0: i32, %arg1: i32) -> (i32, i32) {
    %c0_i32 = arith.constant 0 : i32
    %c0_i32_0 = arith.constant 0 : i32
    %c0_i32_1 = arith.constant 0 : i32
    return %c0_i32, %c0_i32_0 : i32, i32
  }
  func.func @transform_3(%arg0: i32, %arg1: i32) -> (i32, i32) {
    %c0_i32 = arith.constant 0 : i32
    %c0_i32_0 = arith.constant 0 : i32
    %c0_i32_1 = arith.constant 0 : i32
    return %c0_i32, %c0_i32_0 : i32, i32
  }
  func.func @transform_4(%arg0: i32, %arg1: i32) -> (i32, i32) {
    %c0_i32 = arith.constant 0 : i32
    %c0_i32_0 = arith.constant 0 : i32
    %c0_i32_1 = arith.constant 0 : i32
    return %c0_i32, %c0_i32_0 : i32, i32
  }
  func.func @transform_5(%arg0: i32, %arg1: i32) -> (i32, i32) {
    %c0_i32 = arith.constant 0 : i32
    %c0_i32_0 = arith.constant 0 : i32
    %c0_i32_1 = arith.constant 0 : i32
    return %c0_i32, %c0_i32_0 : i32, i32
  }
  func.func @transform_6(%arg0: i32, %arg1: i32) -> (i32, i32) {
    %c0_i32 = arith.constant 0 : i32
    %c0_i32_0 = arith.constant 0 : i32
    %c0_i32_1 = arith.constant 0 : i32
    return %c0_i32, %c0_i32_0 : i32, i32
  }
  func.func @transform_7(%arg0: i32, %arg1: i32) -> (i32, i32, i32) {
    %c0_i32 = arith.constant 0 : i32
    %c0_i32_0 = arith.constant 0 : i32
    return %arg0, %c0_i32, %arg1 : i32, i32, i32
  }
}

</mosaic_0001>

<llo_original>
// kernel: tpu_custom_call.1
$region0: #{tpu_custom_call.1}
  #allocation0 [shape = 'u32[]', space=smem, size = 0x4, offset = 0x4, fixed_abs, tag = 'smem constant byte address 0x4 - core index']
  #allocation1 [shape = 'u32[144,128]{1,0:T(1,128)}', space=vmem, size = 0x12000, scoped, tag = 'internal scratch']
  %s0 = inlined_call_operand.hbm [shape: f32[2,16,256], index: 0, kind: input, shape index: {}]
  %s1 = inlined_call_operand.vmem [shape: f32[4,16], index: 1, kind: input, shape index: {}]
  %s2 = inlined_call_operand.vmem [shape: f32[4,1], index: 2, kind: input, shape index: {}]
  %s3 = inlined_call_operand.vmem [shape: f32[4,4], index: 3, kind: input, shape index: {}]
  %s4 = inlined_call_operand.vmem [shape: f32[4,1], index: 4, kind: input, shape index: {}]
  %s5 = inlined_call_operand.vmem [shape: f32[16,4], index: 5, kind: input, shape index: {}]
  %s6 = inlined_call_operand.vmem [shape: f32[16,1], index: 6, kind: input, shape index: {}]
  %s7 = inlined_call_operand.hbm [shape: f32[2,16,256], index: 7, kind: output, shape index: {}]
  %s8 = sld [smem:[#allocation0]]
  $region65: #{tpu_custom_call.1} parent=0
    _
  %s10 = ssub.s32 1, %s8
  %s11 = scalar_select 0, %s10, %s8
  $region1: #{tpu_custom_call.1} parent=0
    #allocation2 [shape = 'u8[32768]{0}', space=vmem, size = 0x8000, scoped, tag = 'input window, operand 0']
    #allocation3 [shape = 's32[2]{0}', space=sflag, size = 0x8, scoped, tag = 'scoped memory for tpu_custom_call.1']
    #allocation4 [shape = 's32[2]{0}', space=sflag, size = 0x8, scoped, tag = 'scoped memory for tpu_custom_call.1']
    #allocation5 [shape = 'u8[32768]{0}', space=vmem, size = 0x8000, scoped, tag = 'output window, operand 0']
    %12 = vsyncpa [#allocation3], 0
    %s13 = scalar_lea.sflag [#allocation3], 1
    %14 = vsyncpa %s13, 0
    %15 = vsyncpa [#allocation4], 0
    %s16 = scalar_lea.sflag [#allocation4], 1
    %17 = vsyncpa %s16, 0
    loop: start=0, step=1, limit=4
    $region2: #{tpu_custom_call.1} parent=1 // loop_pre_header
      _
    $region3: #{tpu_custom_call.1} parent=1 // loop_header
      %s19 = sphi 0, %s23
      %p20 = scmp.ge.s32.totalorder %s19, 4
      %s26 = sphi 0, %s38
      %s27 = sphi 0, %s34
      %s28 = sphi 0, %s26
      %s29 = sphi 0, %s27
      %s30 = sphi 0, %s28
      %s31 = sphi 0, %s29
      %s43 = sphi 0, %s45
      %s46 = sphi 0, %s43
      %s47 = sphi 0, %s46
      %s63 = sphi 0, %s47
      %s67 = sphi 0, %s67
      %s69 = sphi 0, %s67
      %s70 = sphi 0, %s69
      %s84 = sphi 0, %s70
      %s88 = sphi 0, %s88
      %s90 = sphi 0, %s88
      %s91 = sphi 0, %s90
      %s105 = sphi 0, %s91
      %s109 = sphi 0, %s109
      %s111 = sphi 0, %s109
      %s112 = sphi 0, %s111
      %s126 = sphi 0, %s112
      %s130 = sphi 0, %s130
      %s132 = sphi 0, %s130
      %s133 = sphi 0, %s132
      %s147 = sphi 0, %s133
      %s151 = sphi 0, %s151
      %s153 = sphi 0, %s151
      %s154 = sphi 0, %s153
      %s168 = sphi 0, %s154
      %s172 = sphi 0, %s172
      %s174 = sphi 0, %s172
      %s175 = sphi 0, %s174
      %s189 = sphi 0, %s175
      %s197 = sphi 0, %s199
      %s200 = sphi 0, %s197
      %s201 = sphi 0, %s200
      %s217 = sphi 0, %s201
    $region4: #{tpu_custom_call.1} parent=1 // loop_header_branch
      %22 = sbr.rel (%p20) target = $region8
    $region5: #{tpu_custom_call.1} parent=1 // loop_body
      %s24 = ssub.s32 %s19, 1
      %s25 = ssub.s32 %s19, 2
      %s32 = sadd.s32 1, %s27
      %p33 = scmp.ge.s32.totalorder %s32, 1
      %s34 = scalar_select %p33, 0, %s32
      %s35 = sadd.s32 1, %s26
      %s36 = scalar_select %p33, %s35, %s26
      %p37 = scmp.ge.s32.totalorder %s36, 2
      %s38 = scalar_select %p37, 0, %s36
      %s39 = ssub.s32 %s26, %s38
      %s40 = ssub.s32 %s27, %s34
      %s41 = sor.u32 %s39, %s40
      %p42 = scmp.eq.s32.totalorder %s41, 0
      %s44 = sadd.s32 %s43, 1
      %s45 = scalar_select %p42, %s43, %s44
      %p48 = pneg %p42
      %p49 = scmp.eq.s32.totalorder %s19, 1
      %p50 = por %p48, %p49
      %p51 = scmp.ne.s32.totalorder %s43, %s46
      %p52 = scmp.eq.s32.totalorder %s19, 0
      %p53 = por %p51, %p52
      %p54 = scmp.ne.s32.totalorder %s43, %s46
      %p55 = scmp.eq.s32.totalorder %s24, 1
      %p56 = por %p54, %p55
      %p57 = scmp.ne.s32.totalorder %s46, %s47
      %p58 = scmp.eq.s32.totalorder %s24, 0
      %p59 = por %p57, %p58
      %p60 = scmp.ne.s32.totalorder %s46, %s47
      %p61 = scmp.eq.s32.totalorder %s25, 1
      %p62 = por %p60, %p61
      %p64 = scmp.ne.s32.totalorder %s47, %s63
      %p65 = scmp.eq.s32.totalorder %s25, 0
      %p66 = por %p64, %p65
      %s68 = sadd.s32 %s67, 1
      %p71 = scmp.eq.s32.totalorder %s19, 1
      %p72 = scmp.ne.s32.totalorder %s67, %s69
      %p73 = scmp.eq.s32.totalorder %s19, 0
      %p74 = por %p72, %p73
      %p75 = scmp.ne.s32.totalorder %s67, %s69
      %p76 = scmp.eq.s32.totalorder %s24, 1
      %p77 = por %p75, %p76
      %p78 = scmp.ne.s32.totalorder %s69, %s70
      %p79 = scmp.eq.s32.totalorder %s24, 0
      %p80 = por %p78, %p79
      %p81 = scmp.ne.s32.totalorder %s69, %s70
      %p82 = scmp.eq.s32.totalorder %s25, 1
      %p83 = por %p81, %p82
      %p85 = scmp.ne.s32.totalorder %s70, %s84
      %p86 = scmp.eq.s32.totalorder %s25, 0
      %p87 = por %p85, %p86
      %s89 = sadd.s32 %s88, 1
      %p92 = scmp.eq.s32.totalorder %s19, 1
      %p93 = scmp.ne.s32.totalorder %s88, %s90
      %p94 = scmp.eq.s32.totalorder %s19, 0
      %p95 = por %p93, %p94
      %p96 = scmp.ne.s32.totalorder %s88, %s90
      %p97 = scmp.eq.s32.totalorder %s24, 1
      %p98 = por %p96, %p97
      %p99 = scmp.ne.s32.totalorder %s90, %s91
      %p100 = scmp.eq.s32.totalorder %s24, 0
      %p101 = por %p99, %p100
      %p102 = scmp.ne.s32.totalorder %s90, %s91
      %p103 = scmp.eq.s32.totalorder %s25, 1
      %p104 = por %p102, %p103
      %p106 = scmp.ne.s32.totalorder %s91, %s105
      %p107 = scmp.eq.s32.totalorder %s25, 0
      %p108 = por %p106, %p107
      %s110 = sadd.s32 %s109, 1
      %p113 = scmp.eq.s32.totalorder %s19, 1
      %p114 = scmp.ne.s32.totalorder %s109, %s111
      %p115 = scmp.eq.s32.totalorder %s19, 0
      %p116 = por %p114, %p115
      %p117 = scmp.ne.s32.totalorder %s109, %s111
      %p118 = scmp.eq.s32.totalorder %s24, 1
      %p119 = por %p117, %p118
      %p120 = scmp.ne.s32.totalorder %s111, %s112
      %p121 = scmp.eq.s32.totalorder %s24, 0
      %p122 = por %p120, %p121
      %p123 = scmp.ne.s32.totalorder %s111, %s112
      %p124 = scmp.eq.s32.totalorder %s25, 1
      %p125 = por %p123, %p124
      %p127 = scmp.ne.s32.totalorder %s112, %s126
      %p128 = scmp.eq.s32.totalorder %s25, 0
      %p129 = por %p127, %p128
      %s131 = sadd.s32 %s130, 1
      %p134 = scmp.eq.s32.totalorder %s19, 1
      %p135 = scmp.ne.s32.totalorder %s130, %s132
      %p136 = scmp.eq.s32.totalorder %s19, 0
      %p137 = por %p135, %p136
      %p138 = scmp.ne.s32.totalorder %s130, %s132
      %p139 = scmp.eq.s32.totalorder %s24, 1
      %p140 = por %p138, %p139
      %p141 = scmp.ne.s32.totalorder %s132, %s133
      %p142 = scmp.eq.s32.totalorder %s24, 0
      %p143 = por %p141, %p142
      %p144 = scmp.ne.s32.totalorder %s132, %s133
      %p145 = scmp.eq.s32.totalorder %s25, 1
      %p146 = por %p144, %p145
      %p148 = scmp.ne.s32.totalorder %s133, %s147
      %p149 = scmp.eq.s32.totalorder %s25, 0
      %p150 = por %p148, %p149
      %s152 = sadd.s32 %s151, 1
      %p155 = scmp.eq.s32.totalorder %s19, 1
      %p156 = scmp.ne.s32.totalorder %s151, %s153
      %p157 = scmp.eq.s32.totalorder %s19, 0
      %p158 = por %p156, %p157
      %p159 = scmp.ne.s32.totalorder %s151, %s153
      %p160 = scmp.eq.s32.totalorder %s24, 1
      %p161 = por %p159, %p160
      %p162 = scmp.ne.s32.totalorder %s153, %s154
      %p163 = scmp.eq.s32.totalorder %s24, 0
      %p164 = por %p162, %p163
      %p165 = scmp.ne.s32.totalorder %s153, %s154
      %p166 = scmp.eq.s32.totalorder %s25, 1
      %p167 = por %p165, %p166
      %p169 = scmp.ne.s32.totalorder %s154, %s168
      %p170 = scmp.eq.s32.totalorder %s25, 0
      %p171 = por %p169, %p170
      %s173 = sadd.s32 %s172, 1
      %p176 = scmp.eq.s32.totalorder %s19, 1
      %p177 = scmp.ne.s32.totalorder %s172, %s174
      %p178 = scmp.eq.s32.totalorder %s19, 0
      %p179 = por %p177, %p178
      %p180 = scmp.ne.s32.totalorder %s172, %s174
      %p181 = scmp.eq.s32.totalorder %s24, 1
      %p182 = por %p180, %p181
      %p183 = scmp.ne.s32.totalorder %s174, %s175
      %p184 = scmp.eq.s32.totalorder %s24, 0
      %p185 = por %p183, %p184
      %p186 = scmp.ne.s32.totalorder %s174, %s175
      %p187 = scmp.eq.s32.totalorder %s25, 1
      %p188 = por %p186, %p187
      %p190 = scmp.ne.s32.totalorder %s175, %s189
      %p191 = scmp.eq.s32.totalorder %s25, 0
      %p192 = por %p190, %p191
      %s193 = ssub.s32 %s26, %s38
      %s194 = ssub.s32 %s27, %s34
      %s195 = sor.u32 %s193, %s194
      %p196 = scmp.eq.s32.totalorder %s195, 0
      %s198 = sadd.s32 %s197, 1
      %s199 = scalar_select %p196, %s197, %s198
      %p202 = pneg %p196
      %p203 = scmp.eq.s32.totalorder %s19, 1
      %p204 = por %p202, %p203
      %p205 = scmp.ne.s32.totalorder %s197, %s200
      %p206 = scmp.eq.s32.totalorder %s19, 0
      %p207 = por %p205, %p206
      %p208 = scmp.ne.s32.totalorder %s197, %s200
      %p209 = scmp.eq.s32.totalorder %s24, 1
      %p210 = por %p208, %p209
      %p211 = scmp.ne.s32.totalorder %s200, %s201
      %p212 = scmp.eq.s32.totalorder %s24, 0
      %p213 = por %p211, %p212
      %p214 = scmp.ne.s32.totalorder %s200, %s201
      %p215 = scmp.eq.s32.totalorder %s25, 1
      %p216 = por %p214, %p215
      %p218 = scmp.ne.s32.totalorder %s201, %s217
      %p219 = scmp.eq.s32.totalorder %s25, 0
      %p220 = por %p218, %p219
      %p221 = scmp.le.s32.totalorder 1, %s19
      %p222 = scmp.lt.s32.totalorder %s19, 3
      %p223 = pnand %p221, %p222
      %p224 = pneg %p223
      // Predicated region
      $region9: #{tpu_custom_call.1} parent=5 // pred_check
        _
      $region10: #{tpu_custom_call.1} parent=5 // pred_check_branch
        %226 = sbr.rel (%p223) target = $region12
      $region11: #{tpu_custom_call.1} parent=5 // pred_region
        %s227 = ssub.s32 %s19, 1
        // Predicated region
        $region13: #{tpu_custom_call.1} parent=11 // pred_check
          %p228 = pneg %p80
        $region14: #{tpu_custom_call.1} parent=11 // pred_check_branch
          %230 = sbr.rel (%p228) target = $region16
        $region15: #{tpu_custom_call.1} parent=11 // pred_region
          _
        $region16: #{tpu_custom_call.1} parent=11 // pred_fallthru
          _
        // Predicated region
        $region17: #{tpu_custom_call.1} parent=11 // pred_check
          %p231 = pneg %p101
        $region18: #{tpu_custom_call.1} parent=11 // pred_check_branch
          %233 = sbr.rel (%p231) target = $region20
        $region19: #{tpu_custom_call.1} parent=11 // pred_region
          _
        $region20: #{tpu_custom_call.1} parent=11 // pred_fallthru
          _
        // Predicated region
        $region21: #{tpu_custom_call.1} parent=11 // pred_check
          %p234 = pneg %p122
        $region22: #{tpu_custom_call.1} parent=11 // pred_check_branch
          %236 = sbr.rel (%p234) target = $region24
        $region23: #{tpu_custom_call.1} parent=11 // pred_region
          _
        $region24: #{tpu_custom_call.1} parent=11 // pred_fallthru
          _
        // Predicated region
        $region25: #{tpu_custom_call.1} parent=11 // pred_check
          %p237 = pneg %p143
        $region26: #{tpu_custom_call.1} parent=11 // pred_check_branch
          %239 = sbr.rel (%p237) target = $region28
        $region27: #{tpu_custom_call.1} parent=11 // pred_region
          _
        $region28: #{tpu_custom_call.1} parent=11 // pred_fallthru
          _
        // Predicated region
        $region29: #{tpu_custom_call.1} parent=11 // pred_check
          %p240 = pneg %p164
        $region30: #{tpu_custom_call.1} parent=11 // pred_check_branch
          %242 = sbr.rel (%p240) target = $region32
        $region31: #{tpu_custom_call.1} parent=11 // pred_region
          _
        $region32: #{tpu_custom_call.1} parent=11 // pred_fallthru
          _
        // Predicated region
        $region33: #{tpu_custom_call.1} parent=11 // pred_check
          %p243 = pneg %p185
        $region34: #{tpu_custom_call.1} parent=11 // pred_check_branch
          %245 = sbr.rel (%p243) target = $region36
        $region35: #{tpu_custom_call.1} parent=11 // pred_region
          _
        $region36: #{tpu_custom_call.1} parent=11 // pred_fallthru
          _
      $region12: #{tpu_custom_call.1} parent=5 // pred_fallthru
        _
      %p246 = scmp.lt.s32.totalorder %s19, 2
      // Predicated region
      $region37: #{tpu_custom_call.1} parent=5 // pred_check
        %p247 = pneg %p246
      $region38: #{tpu_custom_call.1} parent=5 // pred_check_branch
        %249 = sbr.rel (%p247) target = $region40
      $region39: #{tpu_custom_call.1} parent=5 // pred_region
        // Predicated region
        $region41: #{tpu_custom_call.1} parent=39 // pred_check
          %p250 = pneg %p53
        $region42: #{tpu_custom_call.1} parent=39 // pred_check_branch
          %252 = sbr.rel (%p250) target = $region44
        $region43: #{tpu_custom_call.1} parent=39 // pred_region
          %s253 = sand.u32 %s43, 1
          %s254 = scalar_lea.sflag [#allocation3], %s253
          %s255 = sand.u32 %s43, 1
          %s256 = smul.addr %s255, 32
          %s257 = scalar_lea.vmem [#allocation2], %s256
          %s258 = smul.u32 2, %s27
          %s260 = ssub.s32 512, 512
          %261 = vsyncadd %s254, %s260
          %s262 = smul.addr %s26, 4
          %s263 = sadd.s32 %s258, %s262
          %s264 = smul.addr %s263, 128
          %s265 = scalar_lea.hbm %s0, %s264
          %s266 = sshll.u32 %s257, 4
          %s267 = int_to_ptr.vmem [resolvable:$true] %s266
          %272 = dma.hbm_to_vmem [thread:$0]  %s265, 512, %s267, %s254, 256, 256, 16
        $region44: #{tpu_custom_call.1} parent=39 // pred_fallthru
          _
      $region40: #{tpu_custom_call.1} parent=5 // pred_fallthru
        _
      %p273 = scmp.le.s32.totalorder 1, %s19
      %p274 = scmp.lt.s32.totalorder %s19, 3
      %p275 = pnand %p273, %p274
      %p276 = pneg %p275
      // Predicated region
      $region45: #{tpu_custom_call.1} parent=5 // pred_check
        _
      $region46: #{tpu_custom_call.1} parent=5 // pred_check_branch
        %278 = sbr.rel (%p275) target = $region48
      $region47: #{tpu_custom_call.1} parent=5 // pred_region
        %s279 = ssub.s32 %s19, 1
        %s280 = sand.u32 %s46, 1
        %s281 = scalar_lea.sflag [#allocation3], %s280
        %s282 = sand.u32 %s46, 1
        %s283 = smul.addr %s282, 32
        %s284 = scalar_lea.vmem [#allocation2], %s283
        // Predicated region
        $region49: #{tpu_custom_call.1} parent=47 // pred_check
          %p285 = pneg %p59
        $region50: #{tpu_custom_call.1} parent=47 // pred_check_branch
          %287 = sbr.rel (%p285) target = $region52
        $region51: #{tpu_custom_call.1} parent=47 // pred_region
          %288 = dma.done %s281, 512
        $region52: #{tpu_custom_call.1} parent=47 // pred_fallthru
          _
        %s289 = sand.u32 %s46, 1
        %s290 = scalar_lea.sflag [#allocation3], %s289
        %s291 = sand.u32 %s46, 1
        %s292 = smul.addr %s291, 32
        %s293 = scalar_lea.vmem [#allocation2], %s292
        %p294 = pneg %p59
        %p295 = pneg %p56
        %p296 = pneg %p80
        %p297 = pneg %p77
        %p298 = pneg %p101
        %p299 = pneg %p98
        %p300 = pneg %p122
        %p301 = pneg %p119
        %p302 = pneg %p143
        %p303 = pneg %p140
        %p304 = pneg %p164
        %p305 = pneg %p161
        %p306 = pneg %p185
        %p307 = pneg %p182
        %p308 = pneg %p213
        %p309 = pneg %p210
        %s310 = sand.u32 %s200, 1
        %s311 = scalar_lea.sflag [#allocation4], %s310
        %s312 = sand.u32 %s200, 1
        %s313 = smul.addr %s312, 32
        %s314 = scalar_lea.vmem [#allocation5], %s313
        %s315 = smul.u32 2, %s29
        %s316 = smul.u32 2, %s29
        %v317 = vld [vmem:[%s1] sm:$0xf]
        %v318 = vld [vmem:[%s284] sm:$0xff]
        %v319 = vld [vmem:[%s284 + $0x8] sm:$0xff]
        %v320 = vld [vmem:[%s284 + $0x10] sm:$0xff]
        %v321 = vld [vmem:[%s284 + $0x18] sm:$0xff]
        %v322 = vld [vmem:[%s2] sm:$0xf]
        %324 = vset.pattern.permute.xlu0 0
        %325 = vperm.xlu0 %324, %v322
        %v326 = vpop.permute.xlu0 %325
        %vm328 = vcmask 130048
        %v330 = vsel %vm328, %v317, 0
        %332 = vmatprep.subr.mxu0 0.0
        %333 = vmatpush1.msra.mxu0 0.0
        %334 = vmatprep.subr.mxu0 0.0
        %335 = vmatpush1.msra.mxu0 0.0
        %336 = vmatprep.subr.mxu0 0.0
        %337 = vmatpush1.msra.mxu0 0.0
        %338 = vmatprep.subr.mxu0 0.0
        %339 = vmatpush1.msra.mxu0 0.0
        %340 = vmatprep.subr.mxu0 0.0
        %341 = vmatpush1.msra.mxu0 0.0
        %342 = vmatprep.subr.mxu0 0.0
        %343 = vmatpush1.msra.mxu0 0.0
        %344 = vmatprep.subr.mxu0 0.0
        %345 = vmatpush1.msra.mxu0 0.0
        %346 = vmatprep.subr.mxu0 0.0
        %347 = vmatpush1.msra.mxu0 0.0
        %348 = vmatprep.subr.mxu0 0.0
        %349 = vmatpush1.msra.mxu0 0.0
        %350 = vmatprep.subr.mxu0 0.0
        %351 = vmatpush1.msra.mxu0 0.0
        %352 = vmatprep.subr.mxu0 0.0
        %353 = vmatpush1.msra.mxu0 0.0
        %354 = vmatprep.subr.mxu0 0.0
        %355 = vmatpush1.msra.mxu0 0.0
        %356 = vmatprep.subr.mxu0 0.0
        %357 = vmatpush1.msra.mxu0 0.0
        %358 = vmatprep.subr.mxu0 0.0
        %359 = vmatpush1.msra.mxu0 0.0
        %360 = vmatprep.subr.mxu0 %v321
        %361 = vmatpush1.msra.mxu0 %v320
        %362 = vmatprep.subr.mxu0 %v319
        %363 = vmatpush1.msra.mxu0 %v318
        %364 = vmatprep.subr.mxu0 0.0
        %365 = vmatpush2.msra.mxu0 0.0
        %366 = vmatprep.subr.mxu0 0.0
        %367 = vmatpush2.msra.mxu0 0.0
        %368 = vmatprep.subr.mxu0 0.0
        %369 = vmatpush2.msra.mxu0 0.0
        %370 = vmatprep.subr.mxu0 0.0
        %371 = vmatpush2.msra.mxu0 0.0
        %372 = vmatprep.subr.mxu0 0.0
        %373 = vmatpush2.msra.mxu0 0.0
        %374 = vmatprep.subr.mxu0 0.0
        %375 = vmatpush2.msra.mxu0 0.0
        %376 = vmatprep.subr.mxu0 0.0
        %377 = vmatpush2.msra.mxu0 0.0
        %378 = vmatprep.subr.mxu0 0.0
        %379 = vmatpush2.msra.mxu0 0.0
        %380 = vmatprep.subr.mxu0 0.0
        %381 = vmatpush2.msra.mxu0 0.0
        %382 = vmatprep.subr.mxu0 0.0
        %383 = vmatpush2.msra.mxu0 0.0
        %384 = vmatprep.subr.mxu0 0.0
        %385 = vmatpush2.msra.mxu0 0.0
        %386 = vmatprep.subr.mxu0 0.0
        %387 = vmatpush2.msra.mxu0 0.0
        %388 = vmatprep.subr.mxu0 0.0
        %389 = vmatpush2.msra.mxu0 0.0
        %390 = vmatprep.subr.mxu0 0.0
        %391 = vmatpush2.msra.mxu0 0.0
        %392 = vmatprep.subr.mxu0 0.0
        %393 = vmatpush2.msra.mxu0 0.0
        %394 = vmatprep.subr.mxu0 0.0
        %395 = vmatpush2.msra.mxu0 0.0
        %396 = vmatprep.mubr.f32.mxu0 0.0
        %397 = vmatmul.mubr.f32.gmra.mxu0 %v330
        %v398 = vpop.f32.mrf.mxu0
        %v399 = vadd.f32 %v326, %v398
        %v400 = vpop.f32.mrf.mxu0
        %v401 = vadd.f32 %v326, %v400
        %402 = vdwg.mxu0
        %v403 = vmax.f32 %v399, 0.0
        %v404 = vmax.f32 %v401, 0.0
        %v405 = vld [vmem:[%s3] sm:$0xf]
        %v406 = vld [vmem:[%s4] sm:$0xf]
        %408 = vset.pattern.permute.xlu0 0
        %409 = vperm.xlu0 %408, %v406
        %v410 = vpop.permute.xlu0 %409
        %vm412 = vcmask 31744
        %v414 = vsel %vm412, %v405, 0
        %vm416 = vcmask 1043456
        %v418 = vsel %vm416, %v403, 0
        %v421 = vsel %vm416, %v404, 0
        %423 = vmatprep.subr.mxu0 0.0
        %424 = vmatpush1.msra.mxu0 0.0
        %425 = vmatprep.subr.mxu0 0.0
        %426 = vmatpush1.msra.mxu0 0.0
        %427 = vmatprep.subr.mxu0 0.0
        %428 = vmatpush1.msra.mxu0 0.0
        %429 = vmatprep.subr.mxu0 0.0
        %430 = vmatpush1.msra.mxu0 0.0
        %431 = vmatprep.subr.mxu0 0.0
        %432 = vmatpush1.msra.mxu0 0.0
        %433 = vmatprep.subr.mxu0 0.0
        %434 = vmatpush1.msra.mxu0 0.0
        %435 = vmatprep.subr.mxu0 0.0
        %436 = vmatpush1.msra.mxu0 0.0
        %437 = vmatprep.subr.mxu0 0.0
        %438 = vmatpush1.msra.mxu0 0.0
        %439 = vmatprep.subr.mxu0 0.0
        %440 = vmatpush1.msra.mxu0 0.0
        %441 = vmatprep.subr.mxu0 0.0
        %442 = vmatpush1.msra.mxu0 0.0
        %443 = vmatprep.subr.mxu0 0.0
        %444 = vmatpush1.msra.mxu0 0.0
        %445 = vmatprep.subr.mxu0 0.0
        %446 = vmatpush1.msra.mxu0 0.0
        %447 = vmatprep.subr.mxu0 0.0
        %448 = vmatpush1.msra.mxu0 0.0
        %449 = vmatprep.subr.mxu0 0.0
        %450 = vmatpush1.msra.mxu0 0.0
        %451 = vmatprep.subr.mxu0 0.0
        %452 = vmatpush1.msra.mxu0 0.0
        %453 = vmatprep.subr.mxu0 %v421
        %454 = vmatpush1.msra.mxu0 %v418
        %455 = vmatprep.subr.mxu0 0.0
        %456 = vmatpush2.msra.mxu0 0.0
        %457 = vmatprep.subr.mxu0 0.0
        %458 = vmatpush2.msra.mxu0 0.0
        %459 = vmatprep.subr.mxu0 0.0
        %460 = vmatpush2.msra.mxu0 0.0
        %461 = vmatprep.subr.mxu0 0.0
        %462 = vmatpush2.msra.mxu0 0.0
        %463 = vmatprep.subr.mxu0 0.0
        %464 = vmatpush2.msra.mxu0 0.0
        %465 = vmatprep.subr.mxu0 0.0
        %466 = vmatpush2.msra.mxu0 0.0
        %467 = vmatprep.subr.mxu0 0.0
        %468 = vmatpush2.msra.mxu0 0.0
        %469 = vmatprep.subr.mxu0 0.0
        %470 = vmatpush2.msra.mxu0 0.0
        %471 = vmatprep.subr.mxu0 0.0
        %472 = vmatpush2.msra.mxu0 0.0
        %473 = vmatprep.subr.mxu0 0.0
        %474 = vmatpush2.msra.mxu0 0.0
        %475 = vmatprep.subr.mxu0 0.0
        %476 = vmatpush2.msra.mxu0 0.0
        %477 = vmatprep.subr.mxu0 0.0
        %478 = vmatpush2.msra.mxu0 0.0
        %479 = vmatprep.subr.mxu0 0.0
        %480 = vmatpush2.msra.mxu0 0.0
        %481 = vmatprep.subr.mxu0 0.0
        %482 = vmatpush2.msra.mxu0 0.0
        %483 = vmatprep.subr.mxu0 0.0
        %484 = vmatpush2.msra.mxu0 0.0
        %485 = vmatprep.subr.mxu0 0.0
        %486 = vmatpush2.msra.mxu0 0.0
        %487 = vmatprep.mubr.f32.mxu0 0.0
        %488 = vmatmul.mubr.f32.gmra.mxu0 %v414
        %v489 = vpop.f32.mrf.mxu0
        %v490 = vadd.f32 %v410, %v489
        %v491 = vpop.f32.mrf.mxu0
        %v492 = vadd.f32 %v410, %v491
        %493 = vdwg.mxu0
        %v494 = vmax.f32 %v490, 0.0
        %v495 = vmax.f32 %v492, 0.0
        %v496 = vld [vmem:[%s5] sm:$0xff]
        %v497 = vld [vmem:[%s5 + $0x8] sm:$0xff]
        %v498 = vld [vmem:[%s6] sm:$0xff]
        %v499 = vld [vmem:[%s6 + $0x8] sm:$0xff]
        %501 = vset.pattern.permute.xlu0 0
        %502 = vperm.xlu0 %501, %v498
        %v503 = vpop.permute.xlu0 %502
        %506 = vset.pattern.permute.xlu0 0
        %507 = vperm.xlu0 %506, %v499
        %v508 = vpop.permute.xlu0 %507
        %v511 = vsel %vm412, %v496, 0
        %v514 = vsel %vm412, %v497, 0
        %v517 = vsel %vm416, %v494, 0
        %v520 = vsel %vm416, %v495, 0
        %522 = vmatprep.subr.mxu0 0.0
        %523 = vmatpush1.msra.mxu0 0.0
        %524 = vmatprep.subr.mxu0 0.0
        %525 = vmatpush1.msra.mxu0 0.0
        %526 = vmatprep.subr.mxu0 0.0
        %527 = vmatpush1.msra.mxu0 0.0
        %528 = vmatprep.subr.mxu0 0.0
        %529 = vmatpush1.msra.mxu0 0.0
        %530 = vmatprep.subr.mxu0 0.0
        %531 = vmatpush1.msra.mxu0 0.0
        %532 = vmatprep.subr.mxu0 0.0
        %533 = vmatpush1.msra.mxu0 0.0
        %534 = vmatprep.subr.mxu0 0.0
        %535 = vmatpush1.msra.mxu0 0.0
        %536 = vmatprep.subr.mxu0 0.0
        %537 = vmatpush1.msra.mxu0 0.0
        %538 = vmatprep.subr.mxu0 0.0
        %539 = vmatpush1.msra.mxu0 0.0
        %540 = vmatprep.subr.mxu0 0.0
        %541 = vmatpush1.msra.mxu0 0.0
        %542 = vmatprep.subr.mxu0 0.0
        %543 = vmatpush1.msra.mxu0 0.0
        %544 = vmatprep.subr.mxu0 0.0
        %545 = vmatpush1.msra.mxu0 0.0
        %546 = vmatprep.subr.mxu0 0.0
        %547 = vmatpush1.msra.mxu0 0.0
        %548 = vmatprep.subr.mxu0 0.0
        %549 = vmatpush1.msra.mxu0 0.0
        %550 = vmatprep.subr.mxu0 0.0
        %551 = vmatpush1.msra.mxu0 0.0
        %552 = vmatprep.subr.mxu0 %v520
        %553 = vmatpush1.msra.mxu0 %v517
        %554 = vmatprep.subr.mxu0 0.0
        %555 = vmatpush2.msra.mxu0 0.0
        %556 = vmatprep.subr.mxu0 0.0
        %557 = vmatpush2.msra.mxu0 0.0
        %558 = vmatprep.subr.mxu0 0.0
        %559 = vmatpush2.msra.mxu0 0.0
        %560 = vmatprep.subr.mxu0 0.0
        %561 = vmatpush2.msra.mxu0 0.0
        %562 = vmatprep.subr.mxu0 0.0
        %563 = vmatpush2.msra.mxu0 0.0
        %564 = vmatprep.subr.mxu0 0.0
        %565 = vmatpush2.msra.mxu0 0.0
        %566 = vmatprep.subr.mxu0 0.0
        %567 = vmatpush2.msra.mxu0 0.0
        %568 = vmatprep.subr.mxu0 0.0
        %569 = vmatpush2.msra.mxu0 0.0
        %570 = vmatprep.subr.mxu0 0.0
        %571 = vmatpush2.msra.mxu0 0.0
        %572 = vmatprep.subr.mxu0 0.0
        %573 = vmatpush2.msra.mxu0 0.0
        %574 = vmatprep.subr.mxu0 0.0
        %575 = vmatpush2.msra.mxu0 0.0
        %576 = vmatprep.subr.mxu0 0.0
        %577 = vmatpush2.msra.mxu0 0.0
        %578 = vmatprep.subr.mxu0 0.0
        %579 = vmatpush2.msra.mxu0 0.0
        %580 = vmatprep.subr.mxu0 0.0
        %581 = vmatpush2.msra.mxu0 0.0
        %582 = vmatprep.subr.mxu0 0.0
        %583 = vmatpush2.msra.mxu0 0.0
        %584 = vmatprep.subr.mxu0 0.0
        %585 = vmatpush2.msra.mxu0 0.0
        %586 = vmatprep.mubr.f32.mxu0 0.0
        %587 = vmatmul.mubr.f32.gmra.mxu0 %v511
        %v588 = vpop.f32.mrf.mxu0
        %v589 = vadd.f32 %v503, %v588
        %v590 = vpop.f32.mrf.mxu0
        %v591 = vadd.f32 %v503, %v590
        %592 = vmatprep.mubr.f32.mxu0 0.0
        %593 = vmatmul.mubr.f32.gmra.mxu0 %v514
        %v594 = vpop.f32.mrf.mxu0
        %v595 = vadd.f32 %v508, %v594
        %v596 = vpop.f32.mrf.mxu0
        %v597 = vadd.f32 %v508, %v596
        %598 = vdwg.mxu0
        %v599 = vadd.f32 %v589, %v318
        %v600 = vadd.f32 %v591, %v319
        %v601 = vadd.f32 %v595, %v320
        %v602 = vadd.f32 %v597, %v321
        %v603 = vmax.f32 %v599, 0.0
        %v604 = vmax.f32 %v600, 0.0
        %v605 = vmax.f32 %v601, 0.0
        %v606 = vmax.f32 %v602, 0.0
        %607 = vst [vmem:[%s314] sm:$0xff] %v603
        %608 = vst [vmem:[%s314 + $0x8] sm:$0xff] %v604
        %609 = vst [vmem:[%s314 + $0x10] sm:$0xff] %v605
        %610 = vst [vmem:[%s314 + $0x18] sm:$0xff] %v606
        %s611 = sand.u32 %s200, 1
        %s612 = scalar_lea.sflag [#allocation4], %s611
        %s613 = sand.u32 %s200, 1
        %s614 = smul.addr %s613, 32
        %s615 = scalar_lea.vmem [#allocation5], %s614
        // Predicated region
        $region53: #{tpu_custom_call.1} parent=47 // pred_check
          %p616 = pneg %p210
        $region54: #{tpu_custom_call.1} parent=47 // pred_check_branch
          %618 = sbr.rel (%p616) target = $region56
        $region55: #{tpu_custom_call.1} parent=47 // pred_region
          %s619 = smul.u32 2, %s29
          %s621 = ssub.s32 512, 512
          %622 = vsyncadd %s612, %s621
          %s623 = smul.addr %s28, 4
          %s624 = sadd.s32 %s619, %s623
          %s625 = smul.addr %s624, 128
          %s626 = scalar_lea.hbm %s7, %s625
          %s627 = sshll.u32 %s615, 4
          %s628 = int_to_ptr.vmem [resolvable:$true] %s627
          %633 = dma.vmem_to_hbm [thread:$0]  %s628, 512, %s626, %s612, 256, 256, 16
        $region56: #{tpu_custom_call.1} parent=47 // pred_fallthru
          _
      $region48: #{tpu_custom_call.1} parent=5 // pred_fallthru
        _
      %p634 = scmp.le.s32.totalorder 2, %s19
      // Predicated region
      $region57: #{tpu_custom_call.1} parent=5 // pred_check
        %p635 = pneg %p634
      $region58: #{tpu_custom_call.1} parent=5 // pred_check_branch
        %637 = sbr.rel (%p635) target = $region60
      $region59: #{tpu_custom_call.1} parent=5 // pred_region
        %s638 = ssub.s32 %s19, 2
        // Predicated region
        $region61: #{tpu_custom_call.1} parent=59 // pred_check
          %p639 = pneg %p216
        $region62: #{tpu_custom_call.1} parent=59 // pred_check_branch
          %641 = sbr.rel (%p639) target = $region64
        $region63: #{tpu_custom_call.1} parent=59 // pred_region
          %s642 = sand.u32 %s201, 1
          %s643 = scalar_lea.sflag [#allocation4], %s642
          %s644 = sand.u32 %s201, 1
          %s645 = smul.addr %s644, 32
          %s646 = scalar_lea.vmem [#allocation5], %s645
          %647 = dma.done %s643, 512
        $region64: #{tpu_custom_call.1} parent=59 // pred_fallthru
          _
      $region60: #{tpu_custom_call.1} parent=5 // pred_fallthru
        _
    $region6: #{tpu_custom_call.1} parent=1 // loop_footer
      %s23 = sadd.s32 1, %s19
    $region7: #{tpu_custom_call.1} parent=1 // loop_footer_branch
      %18 = sbr.rel target = $region3
    $region8: #{tpu_custom_call.1} parent=1 // loop_exit
      _
    %648 = vsyncpa [#allocation3], 1
    %s649 = scalar_lea.sflag [#allocation3], 1
    %650 = vsyncpa %s649, 1
    %651 = vsyncpa [#allocation4], 1
    %s652 = scalar_lea.sflag [#allocation4], 1
    %653 = vsyncpa %s652, 1

</llo_original>
